<compile_context>
chip_gen: v5e
topology: v5e:2x2
jax: 0.10.0
libtpu: 0.0.40
codegen_flags: <defaults>
</compile_context>

<pallas_src>
import functools

import jax
import jax.numpy as jnp
from jax.experimental import pallas as pl
from jax.experimental.pallas import tpu as pltpu


# ------------------------------ small helpers ------------------------------

def _layernorm(x, g, b, eps=1e-5):
    mu = jnp.mean(x, axis=-1, keepdims=True)
    var = jnp.mean((x - mu) ** 2, axis=-1, keepdims=True)
    return (x - mu) * jax.lax.rsqrt(var + eps) * g + b


def _gelu_tanh(x):
    # tanh-approximate GELU (exp/tanh only -> safe Mosaic lowering)
    c = 0.7978845608028654  # sqrt(2/pi)
    return 0.5 * x * (1.0 + jnp.tanh(c * (x + 0.044715 * x * x * x)))


def _resident_spec(arr):
    """Full-array block with a constant index_map: DMA'd once, stays resident."""
    n = arr.ndim
    return pl.BlockSpec(arr.shape, lambda b, _n=n: (0,) * _n)


# ------------------------- tiled linear (input proj) ------------------------

def _linear_kernel(x_ref, w_ref, b_ref, o_ref):
    o_ref[...] = (
        jnp.dot(x_ref[...], w_ref[...], preferred_element_type=jnp.float32)
        + b_ref[...]
    )


def pallas_linear(x2d, w, b2d, block_m=256):
    """y = x @ W + b, tiled over M so it scales to large (B*T) contexts."""
    M, K = x2d.shape
    N = w.shape[1]
    bm = min(block_m, M)
    grid_m = pl.cdiv(M, bm)
    return pl.pallas_call(
        _linear_kernel,
        out_shape=jax.ShapeDtypeStruct((M, N), jnp.float32),
        grid=(grid_m,),
        in_specs=[
            pl.BlockSpec((bm, K), lambda i: (i, 0)),
            pl.BlockSpec((K, N), lambda i: (0, 0)),   # resident
            pl.BlockSpec((1, N), lambda i: (0, 0)),   # resident bias
        ],
        out_specs=pl.BlockSpec((bm, N), lambda i: (i, 0)),
        compiler_params=pltpu.CompilerParams(dimension_semantics=("parallel",)),
    )(x2d, w, b2d)


# ----------------------- fused Perceiver block kernel -----------------------
#
# One kernel instance handles one batch element and performs:
#   xn  = LN(x);  ctx = LN(data) (cross) or xn (self-attn)
#   q_h = (xn @ Wq_h) * scale ; k_h = ctx @ Wk_h ; v_h = ctx @ Wv_h
#   attn = sum_h softmax(mask(q_h k_h^T)) v_h @ Wo_h            (+ bo)
#   x    = x + attn
#   x    = x + GEGLU_FF(LN(x))

def _block_kernel(heads, dim_head, scale, use_ctx, use_mask, *refs):
    o_ref = refs[-1]
    ins = refs[:-1]

    i = 0
    x_ref = ins[i]; i += 1
    ctx_ref = None
    mask_ref = None
    if use_ctx:
        ctx_ref = ins[i]; i += 1
    if use_mask:
        mask_ref = ins[i]; i += 1
    a_ng, a_nb = ins[i], ins[i + 1]; i += 2
    if use_ctx:
        c_ng, c_nb = ins[i], ins[i + 1]; i += 2
    wq, wk, wv, wo, bo = ins[i:i + 5]; i += 5
    f_ng, f_nb, w1, b1, w2, b2 = ins[i:i + 6]

    x = x_ref[0]                                         # (Nq, Ld)
    xn = _layernorm(x, a_ng[...], a_nb[...])
    if use_ctx:
        ctx = _layernorm(ctx_ref[0], c_ng[...], c_nb[...])
    else:
        ctx = xn

    # hoist the mask comparison out of the head loop
    mask_row = (mask_ref[0] > 0.5) if use_mask else None  # (1, Nk) bool
    neg = -jnp.finfo(jnp.float32).max                     # matches masked_fill_(~mask, -max)

    acc = None
    for h in range(heads):                                # static unroll, all in VMEM
        q = jnp.dot(xn, wq[h], preferred_element_type=jnp.float32) * scale
        k = jnp.dot(ctx, wk[h], preferred_element_type=jnp.float32)
        v = jnp.dot(ctx, wv[h], preferred_element_type=jnp.float32)
        sim = jax.lax.dot_general(
            q, k, (((1,), (1,)), ((), ())), preferred_element_type=jnp.float32
        )                                                 # (Nq, Nk)
        if use_mask:
            sim = jnp.where(mask_row, sim, neg)
        sim = sim - jnp.max(sim, axis=-1, keepdims=True)
        p = jnp.exp(sim)
        inv = pl.reciprocal(jnp.sum(p, axis=-1, keepdims=True), approx=True)
        oh = jnp.dot(p, v, preferred_element_type=jnp.float32) * inv   # (Nq, dh)
        contrib = jnp.dot(oh, wo[h], preferred_element_type=jnp.float32)
        acc = contrib if acc is None else acc + contrib
    x = x + acc + bo[...]                                 # residual + output-proj bias

    # GEGLU feed-forward (load weight Refs explicitly before compute)
    xn2 = _layernorm(x, f_ng[...], f_nb[...])
    w1v = w1[...]
    w2v = w2[...]
    hpre = jnp.dot(xn2, w1v, preferred_element_type=jnp.float32) + b1[...]
    hid = w1v.shape[1] // 2                               # 128-aligned split
    g = hpre[:, :hid] * _gelu_tanh(hpre[:, hid:])
    ffo = jnp.dot(g, w2v, preferred_element_type=jnp.float32) + b2[...]
    o_ref[0] = x + ffo


def pallas_perceiver_block(x, attn_p, ff_p, heads, dim_head, ctx=None, mask=None):
    B, Nq, Ld = x.shape
    use_ctx = ctx is not None
    use_mask = mask is not None
    scale = float(dim_head) ** -0.5

    inputs = [x]
    in_specs = [pl.BlockSpec((1, Nq, Ld), lambda b: (b, 0, 0))]
    if use_ctx:
        _, Nk, Dc = ctx.shape
        inputs.append(ctx)
        in_specs.append(pl.BlockSpec((1, Nk, Dc), lambda b: (b, 0, 0)))
    if use_mask:
        Nk = mask.shape[-1]
        inputs.append(mask)                               # (B, 1, Nk) f32
        in_specs.append(pl.BlockSpec((1, 1, Nk), lambda b: (b, 0, 0)))

    weights = [attn_p["norm_g"], attn_p["norm_b"]]
    if use_ctx:
        weights += [attn_p["ctx_norm_g"], attn_p["ctx_norm_b"]]
    weights += [attn_p["wq"], attn_p["wk"], attn_p["wv"], attn_p["wo"], attn_p["bo"]]
    weights += [ff_p["norm_g"], ff_p["norm_b"],
                ff_p["w1"], ff_p["b1"], ff_p["w2"], ff_p["b2"]]
    for w in weights:
        inputs.append(w)
        in_specs.append(_resident_spec(w))

    kern = functools.partial(_block_kernel, heads, dim_head, scale, use_ctx, use_mask)
    return pl.pallas_call(
        kern,
        out_shape=jax.ShapeDtypeStruct((B, Nq, Ld), jnp.float32),
        grid=(B,),
        in_specs=in_specs,
        out_specs=pl.BlockSpec((1, Nq, Ld), lambda b: (b, 0, 0)),
        compiler_params=pltpu.CompilerParams(dimension_semantics=("parallel",)),
    )(*inputs)


# --------------------- fused latent mean-pool + classifier ------------------

def _mean_cls_kernel(x_ref, w_ref, b_ref, o_ref):
    pooled = jnp.mean(x_ref[...], axis=1)                 # mean over latents
    o_ref[...] = (
        jnp.dot(pooled, w_ref[...], preferred_element_type=jnp.float32) + b_ref[...]
    )


def pallas_mean_classifier(x, w, b2d):
    B = x.shape[0]
    N = w.shape[1]
    return pl.pallas_call(
        _mean_cls_kernel,
        out_shape=jax.ShapeDtypeStruct((B, N), jnp.float32),
    )(x, w, b2d)


# ------------------------------- forward pass --------------------------------

def perceiver_audiotext_forward(params, cfg, input_ids, audio_inputs,
                                text_mask, audio_mask):
    B = input_ids.shape[0]

    # TODO(synk): frozen pretrained BERT encoder replaced by a deterministic
    # token-embedding lookup producing (B, T, text_dim).
    text_inputs = jnp.take(params["emb"], input_ids, axis=0)   # (B, T, text_dim)
    T = text_inputs.shape[1]
    A = audio_inputs.shape[1]

    # dim != text_dim / audio_dim  ->  input projections (M-tiled linear)
    text = pallas_linear(
        text_inputs.reshape(B * T, cfg["text_dim"]),
        params["text_w"], params["text_b"]).reshape(B, T, cfg["dim"])
    audio = pallas_linear(
        audio_inputs.reshape(B * A, cfg["audio_dim"]),
        params["audio_w"], params["audio_b"]).reshape(B, A, cfg["dim"])

    data = jnp.concatenate([text, audio], axis=1)              # (B, S, dim)
    mask = jnp.concatenate([text_mask, audio_mask], axis=1)    # (B, S)
    mask = mask.astype(jnp.float32)[:, None, :]                # (B, 1, S)

    # PerceiverIO: latents cross-attend to data, then latent self-attention stack.
    x = jnp.broadcast_to(params["latents"][None],
                         (B, cfg["num_latents"], cfg["latent_dim"]))

    # cross-attention block (attn + FF fused, masked)
    x = pallas_perceiver_block(
        x, params["cross_attn"], params["cross_ff"],
        cfg["cross_heads"], cfg["cross_dim_head"], ctx=data, mask=mask)

    # latent self-attention blocks (attn + FF fused, no mask)
    for layer in params["layers"]:
        x = pallas_perceiver_block(
            x, layer["attn"], layer["ff"],
            cfg["latent_heads"], cfg["latent_dim_head"])

    # use_queries=False path: mean over latents then Linear(latent_dim, classes)
    logits = pallas_mean_classifier(x, params["cls_w"], params["cls_b"])
    return logits


# -------------------------------- param init ---------------------------------

def init_params(key, cfg):
    keys = iter(jax.random.split(key, 64))

    def nrm(shape, s=0.05):
        return jax.random.normal(next(keys), shape, jnp.float32) * s

    def attn_p(qdim, ctxdim, heads, dim_head, with_ctx_norm):
        # per-head weight layout: no host/kernel reshapes of activations needed
        p = dict(
            norm_g=jnp.ones((1, qdim), jnp.float32),
            norm_b=jnp.zeros((1, qdim), jnp.float32),
            wq=nrm((heads, qdim, dim_head)),
            wk=nrm((heads, ctxdim, dim_head)),
            wv=nrm((heads, ctxdim, dim_head)),
            wo=nrm((heads, dim_head, qdim)),
            bo=jnp.zeros((1, qdim), jnp.float32),
        )
        if with_ctx_norm:
            p["ctx_norm_g"] = jnp.ones((1, ctxdim), jnp.float32)
            p["ctx_norm_b"] = jnp.zeros((1, ctxdim), jnp.float32)
        return p

    def ff_p(d, mult=4):
        return dict(
            norm_g=jnp.ones((1, d), jnp.float32),
            norm_b=jnp.zeros((1, d), jnp.float32),
            w1=nrm((d, d * mult * 2)),
            b1=jnp.zeros((1, d * mult * 2), jnp.float32),
            w2=nrm((d * mult, d)),
            b2=jnp.zeros((1, d), jnp.float32),
        )

    params = dict(
        emb=nrm((cfg["vocab_size"], cfg["text_dim"]), 0.1),
        text_w=nrm((cfg["text_dim"], cfg["dim"])),
        text_b=jnp.zeros((1, cfg["dim"]), jnp.float32),
        audio_w=nrm((cfg["audio_dim"], cfg["dim"])),
        audio_b=jnp.zeros((1, cfg["dim"]), jnp.float32),
        latents=nrm((cfg["num_latents"], cfg["latent_dim"]), 0.1),
        cross_attn=attn_p(cfg["latent_dim"], cfg["dim"],
                          cfg["cross_heads"], cfg["cross_dim_head"], True),
        cross_ff=ff_p(cfg["latent_dim"]),
        layers=[
            dict(
                attn=attn_p(cfg["latent_dim"], cfg["latent_dim"],
                            cfg["latent_heads"], cfg["latent_dim_head"], False),
                ff=ff_p(cfg["latent_dim"]),
            )
            for _ in range(cfg["depth"])
        ],
        cls_w=nrm((cfg["latent_dim"], cfg["num_classes"])),
        cls_b=jnp.zeros((1, cfg["num_classes"]), jnp.float32),
    )
    return params


# ----------------------------------- main ------------------------------------

if __name__ == "__main__":
    cfg = dict(
        text_dim=48, audio_dim=40, dim=32, queries_dim=32, num_classes=5,
        depth=2, num_latents=16, cross_heads=1, latent_heads=4,
        cross_dim_head=32, latent_dim_head=16, latent_dim=64, vocab_size=100,
    )

    key = jax.random.PRNGKey(0)
    kp, kid, ka, kma = jax.random.split(key, 4)
    params = init_params(kp, cfg)

    B, T, A = 2, 8, 8
    input_ids = jax.random.randint(kid, (B, T), 0, cfg["vocab_size"])
    audio_inputs = jax.random.normal(ka, (B, A, cfg["audio_dim"]), jnp.float32)
    text_mask = jnp.ones((B, T), jnp.int32)
    audio_mask = (jax.random.uniform(kma, (B, A)) > 0.3).astype(jnp.int32)
    audio_mask = audio_mask.at[:, 0].set(1)  # guarantee at least one valid frame

    logits = perceiver_audiotext_forward(
        params, cfg, input_ids, audio_inputs, text_mask, audio_mask)
    logits = jax.block_until_ready(logits)

    assert logits.shape == (B, cfg["num_classes"]), logits.shape
    assert bool(jnp.all(jnp.isfinite(logits)))
    print("KERNEL_OK")
</pallas_src>

<mosaic_0001>
module attributes {stable_mosaic.version = 11 : i64} {
  func.func @_linear_kernel(%arg0: i32, %arg1: memref<16x48xf32, #tpu.memory_space<vmem>>, %arg2: memref<48x32xf32, #tpu.memory_space<vmem>>, %arg3: memref<1x32xf32, #tpu.memory_space<vmem>>, %arg4: memref<16x32xf32, #tpu.memory_space<vmem>>) attributes {dimension_semantics = [#tpu.dimension_semantics<parallel>], iteration_bounds = array<i64: 1>, scalar_prefetch = 0 : i64, scratch_operands = 0 : i64, tpu.core_type = #tpu.core_type<tc>, window_params = [{transform_indices = @transform_0, window_bounds = array<i64: 16, 48>}, {pipeline_mode = #tpu.pipeline_mode<synchronous>, transform_indices = @transform_1, window_bounds = array<i64: 48, 32>}, {pipeline_mode = #tpu.pipeline_mode<synchronous>, transform_indices = @transform_2, window_bounds = array<i64: 1, 32>}, {transform_indices = @transform_3, window_bounds = array<i64: 16, 32>}]} {
    %c0 = arith.constant 0 : index
    %c0_0 = arith.constant 0 : index
    %0 = vector.load %arg1[%c0, %c0_0] : memref<16x48xf32, #tpu.memory_space<vmem>>, vector<16x48xf32>
    %c0_1 = arith.constant 0 : index
    %c0_2 = arith.constant 0 : index
    %1 = vector.load %arg2[%c0_1, %c0_2] : memref<48x32xf32, #tpu.memory_space<vmem>>, vector<48x32xf32>
    %cst = arith.constant dense<0.000000e+00> : vector<16x32xf32>
    %2 = tpu.matmul %0, %1, %cst {dimension_numbers = #tpu.dot_dimension_numbers<[1], [0], [0], [1], [0, 0, 1, 1], [], []>} : vector<16x48xf32>, vector<48x32xf32>, vector<16x32xf32> -> vector<16x32xf32>
    %c0_3 = arith.constant 0 : index
    %c0_4 = arith.constant 0 : index
    %3 = vector.load %arg3[%c0_3, %c0_4] : memref<1x32xf32, #tpu.memory_space<vmem>>, vector<1x32xf32>
    %4 = vector.broadcast %3 : vector<1x32xf32> to vector<16x32xf32>
    %5 = arith.addf %2, %4 : vector<16x32xf32>
    %c0_5 = arith.constant 0 : index
    %c0_6 = arith.constant 0 : index
    %6 = vector.load %arg4[%c0_5, %c0_6] : memref<16x32xf32, #tpu.memory_space<vmem>>, vector<16x32xf32>
    tpu.vector_store %arg4[%c0_5, %c0_6], %5 {strides = array<i32>} : memref<16x32xf32, #tpu.memory_space<vmem>>, vector<16x32xf32>,
    return
  }
  func.func @transform_0(%arg0: i32) -> (i32, i32) {
    %c0_i32 = arith.constant 0 : i32
    %c0_i32_0 = arith.constant 0 : i32
    return %arg0, %c0_i32 : i32, i32
  }
  func.func @transform_1(%arg0: i32) -> (i32, i32) {
    %c0_i32 = arith.constant 0 : i32
    %c0_i32_0 = arith.constant 0 : i32
    %c0_i32_1 = arith.constant 0 : i32
    return %c0_i32, %c0_i32_0 : i32, i32
  }
  func.func @transform_2(%arg0: i32) -> (i32, i32) {
    %c0_i32 = arith.constant 0 : i32
    %c0_i32_0 = arith.constant 0 : i32
    %c0_i32_1 = arith.constant 0 : i32
    return %c0_i32, %c0_i32_0 : i32, i32
  }
  func.func @transform_3(%arg0: i32) -> (i32, i32) {
    %c0_i32 = arith.constant 0 : i32
    %c0_i32_0 = arith.constant 0 : i32
    return %arg0, %c0_i32 : i32, i32
  }
}

</mosaic_0001>

<llo_original>
// kernel: tpu_custom_call.1
$region0: #{tpu_custom_call.1}
  #allocation0 [shape = 'u32[]', space=smem, size = 0x4, offset = 0x4, fixed_abs, tag = 'smem constant byte address 0x4 - core index']
  #allocation1 [shape = 'u32[72,128]{1,0:T(1,128)}', space=vmem, size = 0x9000, scoped, tag = 'internal scratch']
  %s0 = inlined_call_operand.vmem [shape: f32[16,48], index: 0, kind: input, shape index: {}]
  %s1 = inlined_call_operand.vmem [shape: f32[48,32], index: 1, kind: input, shape index: {}]
  %s2 = inlined_call_operand.vmem [shape: f32[1,32], index: 2, kind: input, shape index: {}]
  %s3 = inlined_call_operand.hbm [shape: f32[16,32], index: 3, kind: output, shape index: {}]
  %s4 = sld [smem:[#allocation0]]
  $region22: #{tpu_custom_call.1} parent=0
    _
  %s6 = ssub.s32 1, %s4
  %s7 = scalar_select 0, %s6, %s4
  $region1: #{tpu_custom_call.1} parent=0
    #allocation2 [shape = 'u8[8192]{0}', space=vmem, size = 0x2000, scoped, tag = 'output window, operand 0, single buffered']
    #allocation3 [shape = 's32[1]{0}', space=sflag, size = 0x4, scoped, tag = 'scoped memory for tpu_custom_call.1']
    %8 = vsyncpa [#allocation3], 0
    // Predicated region
    $region2: #{tpu_custom_call.1} parent=1 // pred_check
      _
    $region3: #{tpu_custom_call.1} parent=1 // pred_check_branch
      %10 = sbr.rel (0) target = $region5
    $region4: #{tpu_custom_call.1} parent=1 // pred_region
      _
    $region5: #{tpu_custom_call.1} parent=1 // pred_fallthru
      _
    // Predicated region
    $region6: #{tpu_custom_call.1} parent=1 // pred_check
      _
    $region7: #{tpu_custom_call.1} parent=1 // pred_check_branch
      %12 = sbr.rel (0) target = $region9
    $region8: #{tpu_custom_call.1} parent=1 // pred_region
      _
    $region9: #{tpu_custom_call.1} parent=1 // pred_fallthru
      _
    // Predicated region
    $region10: #{tpu_custom_call.1} parent=1 // pred_check
      _
    $region11: #{tpu_custom_call.1} parent=1 // pred_check_branch
      %14 = sbr.rel (0) target = $region13
    $region12: #{tpu_custom_call.1} parent=1 // pred_region
      _
    $region13: #{tpu_custom_call.1} parent=1 // pred_fallthru
      _
    %v15 = vld [vmem:[%s0] sm:$0xff]
    %v16 = vld [vmem:[%s0 + $0x8] sm:$0xff]
    %v17 = vld [vmem:[%s1] sm:$0xff]
    %v18 = vld [vmem:[%s1 + $0x8] sm:$0xff]
    %v19 = vld [vmem:[%s1 + $0x10] sm:$0xff]
    %v20 = vld [vmem:[%s1 + $0x18] sm:$0xff]
    %v21 = vld [vmem:[%s1 + $0x20] sm:$0xff]
    %v22 = vld [vmem:[%s1 + $0x28] sm:$0xff]
    %v23 = vld [vmem:[%s2] sm:$0x1]
    %v25 = vperm.slane %v23, 0
    %vm27 = vcmask 392192
    %v29 = vsel %vm27, %v15, 0
    %v32 = vsel %vm27, %v16, 0
    %34 = vmatpush.msra.mxu0 0.0
    %35 = vmatpush.msra.mxu0 0.0
    %36 = vmatpush.msra.mxu0 0.0
    %37 = vmatpush.msra.mxu0 0.0
    %38 = vmatpush.msra.mxu0 0.0
    %39 = vmatpush.msra.mxu0 0.0
    %40 = vmatpush.msra.mxu0 0.0
    %41 = vmatpush.msra.mxu0 0.0
    %42 = vmatpush.msra.mxu0 0.0
    %43 = vmatpush.msra.mxu0 0.0
    %44 = vmatpush.msra.mxu0 %v22
    %45 = vmatpush.msra.mxu0 %v21
    %46 = vmatpush.msra.mxu0 %v20
    %47 = vmatpush.msra.mxu0 %v19
    %48 = vmatpush.msra.mxu0 %v18
    %49 = vmatpush.msra.mxu0 %v17
    %50 = vmatmul.f32.gmra.mxu0 %v29
    %v51 = vpop.f32.mrf.mxu0
    %v52 = vadd.f32 %v25, %v51
    %53 = vmatmul.f32.gmra.mxu0 %v32
    %v54 = vpop.f32.mrf.mxu0
    %v55 = vadd.f32 %v25, %v54
    %56 = vdwg.mxu0
    %vm57 = vcmask 261120
    %58 = vst.msk [vmem:[#allocation2] sm:$0xff] %vm57, %v52
    %59 = vst.msk [vmem:[#allocation2 + $0x8] sm:$0xff] %vm57, %v55
    // Predicated region
    $region14: #{tpu_custom_call.1} parent=1 // pred_check
      _
    $region15: #{tpu_custom_call.1} parent=1 // pred_check_branch
      %61 = sbr.rel (0) target = $region17
    $region16: #{tpu_custom_call.1} parent=1 // pred_region
      %63 = vsyncadd [#allocation3], 0
      %s64 = sshll.u32 [#allocation2], 4
      %s65 = int_to_ptr.vmem [resolvable:$true] %s64
      %s66 = sshll.u32 %s3, 4
      %s67 = int_to_ptr.hbm [resolvable:$true] %s66
      %72 = dma.vmem_to_hbm [thread:$0]  %s65, 256, %s67, [#allocation3], 128, 128, 8
    $region17: #{tpu_custom_call.1} parent=1 // pred_fallthru
      _
    // Predicated region
    $region18: #{tpu_custom_call.1} parent=1 // pred_check
      _
    $region19: #{tpu_custom_call.1} parent=1 // pred_check_branch
      %74 = sbr.rel (0) target = $region21
    $region20: #{tpu_custom_call.1} parent=1 // pred_region
      %76 = dma.done [#allocation3], 256
    $region21: #{tpu_custom_call.1} parent=1 // pred_fallthru
      _
    %77 = vsyncpa [#allocation3], 1

</llo_original>
